<compile_context>
chip_gen: v6e
topology: v6e:2x2x1
jax: 0.10.0
libtpu: 0.0.40
codegen_flags: <defaults>
</compile_context>

<pallas_src>
import functools

import jax
import jax.numpy as jnp
from jax.experimental import pallas as pl
from jax.experimental.pallas import tpu as pltpu

BN_EPS = 1e-5
LANE = 128
SUBLANE = 16                        # batch pad: safe for bf16 (16) and f32 (8) layouts
_HEADROOM = 16 * 1024 * 1024        # leave for compiler-internal scratch
_DEFAULT_VMEM = 64 * 1024 * 1024    # conservative (v7x physical) if the query fails


def _round_up(x, m):
    return (x + m - 1) // m * m


def _vmem_budget():
    """(planning_budget_bytes, vmem_limit_bytes) derived from the actual part."""
    try:
        cap = getattr(pltpu.get_tpu_info(), "vmem_capacity_bytes", None)
    except Exception:
        cap = None
    if not cap:
        cap = _DEFAULT_VMEM
    limit = max(int(cap) - _HEADROOM, 16 * 1024 * 1024)
    budget = int(limit * 0.85)      # slack for double-buffering / accounting error
    return budget, limit


def _divisor_tiles(dim_pad):
    """Multiples of 128 that divide dim_pad, descending."""
    return [t for t in range(dim_pad, LANE - 1, -LANE) if dim_pad % t == 0]


def _ordered_n_tiles(n_pad):
    """Candidate N tiles: prefer >=2 tiles that are >=256 wide (keeps both v7x
    TensorCores busy; essentially free on 1-TC parts because x stays VMEM-resident),
    then the single full tile (so n_pad=640 does not degenerate to 5x128), then 128."""
    cands = _divisor_tiles(n_pad)
    multi_big = [t for t in cands if n_pad // t >= 2 and t >= 2 * LANE]
    multi_two = [t for t in cands if n_pad // t == 2 and t < 2 * LANE]
    single = [t for t in cands if n_pad // t == 1]
    rest = [t for t in cands
            if t not in multi_big and t not in multi_two and t not in single]
    return multi_big + multi_two + single + rest


def _plan(b_pad, k_pad, n_pad, msize, out_size, budget):
    """Pick (tn, tk, x_resident). tk == k_pad selects the single-shot full-K kernel."""
    def common(tn):
        out_b = b_pad * tn * out_size * 2           # double-buffered output block
        vec_b = 2 * 8 * tn * 4 * 2                  # gamma/beta rows (sublane-padded)
        tmp_b = 3 * b_pad * tn * 4                  # finalize f32 temporaries
        return out_b + vec_b + tmp_b

    x_res_b = b_pad * k_pad * msize * 2             # resident x (count 2 buffers)

    # Preferred: full-K reduction, x resident, no scratch, no pl.when branches.
    for tn in _ordered_n_tiles(n_pad):
        if x_res_b + k_pad * tn * msize * 2 + common(tn) <= budget:
            return tn, k_pad, True

    # Fallback: split K. Keep x resident if it still fits, else stream it per K tile.
    acc_row = 0 if out_size == 4 else b_pad * 4     # scratch acc only if out != f32
    for tn in _ordered_n_tiles(n_pad):
        base = common(tn) + acc_row * tn
        for tk in _divisor_tiles(k_pad):
            if x_res_b + tk * tn * msize * 2 + base <= budget:
                return tn, tk, True
        for tk in _divisor_tiles(k_pad):
            if b_pad * tk * msize * 2 + tk * tn * msize * 2 + base <= budget:
                return tn, tk, False

    return LANE, LANE, False                        # last resort: smallest tiles


def _make_fullk_kernel(b_real, b_pad):
    """Single-shot kernel: whole-K matmul + BatchNorm(train) + ReLU fused, no scratch."""
    pad_rows = float(b_pad - b_real)
    inv_b = 1.0 / float(b_real)

    def kernel(x_ref, w_ref, g_ref, be_ref, o_ref):
        # Linear (bias dropped: it cancels exactly under training-mode BatchNorm).
        y = jnp.dot(x_ref[...], w_ref[...], preferred_element_type=jnp.float32)
        # Padded batch rows of y are exactly 0 (zero-padded x rows, no bias), so the
        # b_pad-row sums reduce to the real-batch statistics with an analytic fixup.
        mean = jnp.sum(y, axis=0, keepdims=True) * inv_b
        centered = y - mean
        var = (jnp.sum(centered * centered, axis=0, keepdims=True)
               - pad_rows * (mean * mean)) * inv_b          # biased var (PyTorch BN)
        var = jnp.maximum(var, 0.0)
        scale = g_ref[...] * jax.lax.rsqrt(var + BN_EPS)     # fold gamma * inv_std
        o_ref[...] = jnp.maximum(centered * scale + be_ref[...], 0.0).astype(o_ref.dtype)

    return kernel


def _make_splitk_kernel(b_real, b_pad, tk, x_resident, use_scratch):
    """K-split kernel: accumulate into the resident f32 output block (or a scratch
    buffer when out dtype != f32); finalize BN + ReLU on the last K step."""
    pad_rows = float(b_pad - b_real)
    inv_b = 1.0 / float(b_real)

    def kernel(x_ref, w_ref, g_ref, be_ref, o_ref, *scratch):
        acc = scratch[0] if use_scratch else o_ref
        k = pl.program_id(1)

        @pl.when(k == 0)
        def _init():
            acc[...] = jnp.zeros_like(acc)

        if x_resident:
            x_blk = x_ref[:, pl.ds(pl.multiple_of(k * tk, LANE), tk)]
        else:
            x_blk = x_ref[...]
        acc[...] += jnp.dot(x_blk, w_ref[...], preferred_element_type=jnp.float32)

        @pl.when(k == pl.num_programs(1) - 1)
        def _finalize():
            y = acc[...]
            mean = jnp.sum(y, axis=0, keepdims=True) * inv_b
            centered = y - mean
            var = (jnp.sum(centered * centered, axis=0, keepdims=True)
                   - pad_rows * (mean * mean)) * inv_b
            var = jnp.maximum(var, 0.0)
            scale = g_ref[...] * jax.lax.rsqrt(var + BN_EPS)
            o_ref[...] = jnp.maximum(centered * scale + be_ref[...], 0.0).astype(o_ref.dtype)

    return kernel


def prepare_simplefc_params(w, b, gamma, beta, *, matmul_dtype=jnp.bfloat16,
                            out_dtype=jnp.float32):
    """One-time parameter prep: transpose, zero-pad to lane-aligned shapes, cast.

    w: [dim_out, dim_in] (PyTorch nn.Linear layout); b/gamma/beta: [dim_out].
    The Linear bias is dropped: under training-mode BatchNorm it only shifts the batch
    mean, so (y - mean) is mathematically identical without it.  This, together with
    zero-padded x rows, is what makes the in-kernel batch statistics exact.
    Use matmul_dtype=jnp.float32 if bit-faithfulness to the f32 PyTorch Linear matters.
    """
    _ = b
    dim_out, dim_in = w.shape
    k_pad = _round_up(dim_in, LANE)
    n_pad = _round_up(dim_out, LANE)

    w_t = jnp.zeros((k_pad, n_pad), jnp.float32)
    w_t = w_t.at[:dim_in, :dim_out].set(jnp.asarray(w, jnp.float32).T)
    w_t = w_t.astype(matmul_dtype)

    g = jnp.ones((1, n_pad), jnp.float32).at[0, :dim_out].set(
        jnp.asarray(gamma, jnp.float32))
    be = jnp.zeros((1, n_pad), jnp.float32).at[0, :dim_out].set(
        jnp.asarray(beta, jnp.float32))

    return dict(w_t=w_t, gamma=g, beta=be, dim_in=dim_in, dim_out=dim_out,
                matmul_dtype=matmul_dtype, out_dtype=out_dtype)


def simple_fc_apply(params, x, *, _force_tiles=None):
    """x: [B, dim_in] -> [B, dim_out]. Linear -> BatchNorm1d(train) -> ReLU."""
    B, dim_in = x.shape
    assert dim_in == params["dim_in"]
    dim_out = params["dim_out"]
    w_t, g, be = params["w_t"], params["gamma"], params["beta"]
    mdt, odt = params["matmul_dtype"], params["out_dtype"]
    k_pad, n_pad = w_t.shape
    b_pad = _round_up(B, SUBLANE)
    msize = jnp.dtype(mdt).itemsize
    osize = jnp.dtype(odt).itemsize

    # Skip the wrapper-side pad (a separate HBM round-trip) when x is already aligned.
    if B == b_pad and dim_in == k_pad:
        x_p = x.astype(mdt)
    else:
        x_p = jnp.zeros((b_pad, k_pad), mdt).at[:B, :dim_in].set(x.astype(mdt))

    budget, vmem_limit = _vmem_budget()
    if _force_tiles is None:
        tn, tk, x_resident = _plan(b_pad, k_pad, n_pad, msize, osize, budget)
    else:
        tn, tk, x_resident = _force_tiles
    n_tiles = n_pad // tn
    out_shape = jax.ShapeDtypeStruct((b_pad, n_pad), odt)

    if tk == k_pad:
        # Single-shot full-K path: 1-D grid over N tiles; x block index is constant,
        # so x is DMA'd once and stays VMEM-resident for the whole grid.
        out = pl.pallas_call(
            _make_fullk_kernel(B, b_pad),
            out_shape=out_shape,
            grid=(n_tiles,),
            in_specs=[
                pl.BlockSpec((b_pad, k_pad), lambda n: (0, 0)),   # x (resident)
                pl.BlockSpec((k_pad, tn), lambda n: (0, n)),      # W^T (pre-transposed)
                pl.BlockSpec((1, tn), lambda n: (0, n)),          # gamma
                pl.BlockSpec((1, tn), lambda n: (0, n)),          # beta
            ],
            out_specs=pl.BlockSpec((b_pad, tn), lambda n: (0, n)),
            compiler_params=pltpu.CompilerParams(
                dimension_semantics=("parallel",),
                vmem_limit_bytes=vmem_limit),
        )(x_p, w_t, g, be)
    else:
        # Fallback: K split (reduction innermost). Output block is resident across K
        # (index_map ignores k) and doubles as the f32 accumulator when possible.
        k_tiles = k_pad // tk
        use_scratch = jnp.dtype(odt) != jnp.dtype(jnp.float32)
        if x_resident:
            x_spec = pl.BlockSpec((b_pad, k_pad), lambda n, k: (0, 0))
        else:
            x_spec = pl.BlockSpec((b_pad, tk), lambda n, k: (0, k))
        out = pl.pallas_call(
            _make_splitk_kernel(B, b_pad, tk, x_resident, use_scratch),
            out_shape=out_shape,
            grid=(n_tiles, k_tiles),
            in_specs=[
                x_spec,
                pl.BlockSpec((tk, tn), lambda n, k: (k, n)),
                pl.BlockSpec((1, tn), lambda n, k: (0, n)),
                pl.BlockSpec((1, tn), lambda n, k: (0, n)),
            ],
            out_specs=pl.BlockSpec((b_pad, tn), lambda n, k: (0, n)),
            scratch_shapes=([pltpu.VMEM((b_pad, tn), jnp.float32)]
                            if use_scratch else []),
            compiler_params=pltpu.CompilerParams(
                dimension_semantics=("parallel", "arbitrary"),
                vmem_limit_bytes=vmem_limit),
        )(x_p, w_t, g, be)

    # Skip the trailing slice (another full HBM copy) when nothing was padded.
    if (B, dim_out) != (b_pad, n_pad):
        out = out[:B, :dim_out]
    return out


def reference_forward(x, w, b, gamma, beta):
    y = x @ w.T + b
    mean = y.mean(axis=0, keepdims=True)
    var = ((y - mean) ** 2).mean(axis=0, keepdims=True)   # biased, like PyTorch BN
    y = gamma * (y - mean) / jnp.sqrt(var + BN_EPS) + beta
    return jnp.maximum(y, 0.0)


if __name__ == "__main__":
    key = jax.random.PRNGKey(0)

    # ----- small shapes consistent with the module's FC forward -----
    B, dim_in, dim_out = 8, 32, 64

    kx, kw, kb = jax.random.split(key, 3)
    x = jax.random.normal(kx, (B, dim_in), dtype=jnp.float32)

    # PyTorch nn.Linear default init: U(-1/sqrt(dim_in), 1/sqrt(dim_in))
    bound = 1.0 / jnp.sqrt(jnp.float32(dim_in))
    w = jax.random.uniform(kw, (dim_out, dim_in), jnp.float32, -bound, bound)
    b = jax.random.uniform(kb, (dim_out,), jnp.float32, -bound, bound)
    gamma = jnp.ones((dim_out,), jnp.float32)   # BatchNorm1d default affine init
    beta = jnp.zeros((dim_out,), jnp.float32)

    params = prepare_simplefc_params(w, b, gamma, beta)      # one-time prep
    fwd = jax.jit(functools.partial(simple_fc_apply, params))
    out = jax.block_until_ready(fwd(x))
    assert out.shape == (B, dim_out)

    # Primary check: reference with the kernel's bf16-operand / f32-accumulate policy.
    x_bf = x.astype(jnp.bfloat16).astype(jnp.float32)
    w_bf = w.astype(jnp.bfloat16).astype(jnp.float32)
    ref_bf = reference_forward(x_bf, w_bf, b, gamma, beta)
    assert jnp.allclose(out, ref_bf, atol=5e-3, rtol=5e-3), "mismatch vs bf16-policy reference"
    # Loose sanity check vs the full-f32 PyTorch-faithful reference.
    ref = reference_forward(x, w, b, gamma, beta)
    assert jnp.allclose(out, ref, atol=1e-1, rtol=1e-1), "mismatch vs f32 reference"

    # ----- exercise the split-K fallback paths (resident and streamed x) too -----
    B2, din2, dout2 = 16, 256, 256
    kx2, kw2, kb2 = jax.random.split(jax.random.PRNGKey(1), 3)
    x2 = jax.random.normal(kx2, (B2, din2), dtype=jnp.float32)
    bound2 = 1.0 / jnp.sqrt(jnp.float32(din2))
    w2 = jax.random.uniform(kw2, (dout2, din2), jnp.float32, -bound2, bound2)
    b2 = jax.random.uniform(kb2, (dout2,), jnp.float32, -bound2, bound2)
    g2 = jnp.ones((dout2,), jnp.float32)
    be2 = jnp.zeros((dout2,), jnp.float32)
    params2 = prepare_simplefc_params(w2, b2, g2, be2)
    ref2 = reference_forward(x2.astype(jnp.bfloat16).astype(jnp.float32),
                             w2.astype(jnp.bfloat16).astype(jnp.float32),
                             b2, g2, be2)
    for force in [None, (128, 128, True), (128, 128, False)]:
        f2 = jax.jit(functools.partial(simple_fc_apply, params2, _force_tiles=force))
        o2 = jax.block_until_ready(f2(x2))
        assert o2.shape == (B2, dout2)
        assert jnp.allclose(o2, ref2, atol=5e-3, rtol=5e-3), f"mismatch (tiles={force})"

    print("KERNEL_OK")
</pallas_src>

<mosaic_0001>
module attributes {stable_mosaic.version = 11 : i64} {
  func.func @kernel(%arg0: i32, %arg1: memref<16x128xbf16, #tpu.memory_space<vmem>>, %arg2: memref<128x128xbf16, #tpu.memory_space<vmem>>, %arg3: memref<1x128xf32, #tpu.memory_space<vmem>>, %arg4: memref<1x128xf32, #tpu.memory_space<vmem>>, %arg5: memref<16x128xf32, #tpu.memory_space<vmem>>) attributes {dimension_semantics = [#tpu.dimension_semantics<parallel>], iteration_bounds = array<i64: 1>, scalar_prefetch = 0 : i64, scratch_operands = 0 : i64, tpu.core_type = #tpu.core_type<tc>, window_params = [{pipeline_mode = #tpu.pipeline_mode<synchronous>, transform_indices = @transform_0, window_bounds = array<i64: 16, 128>}, {transform_indices = @transform_1, window_bounds = array<i64: 128, 128>}, {transform_indices = @transform_2, window_bounds = array<i64: 1, 128>}, {transform_indices = @transform_3, window_bounds = array<i64: 1, 128>}, {transform_indices = @transform_4, window_bounds = array<i64: 16, 128>}]} {
    %c0 = arith.constant 0 : index
    %c0_0 = arith.constant 0 : index
    %0 = vector.load %arg1[%c0, %c0_0] : memref<16x128xbf16, #tpu.memory_space<vmem>>, vector<16x128xbf16>
    %c0_1 = arith.constant 0 : index
    %c0_2 = arith.constant 0 : index
    %1 = vector.load %arg2[%c0_1, %c0_2] : memref<128x128xbf16, #tpu.memory_space<vmem>>, vector<128x128xbf16>
    %cst = arith.constant dense<0.000000e+00> : vector<16x128xf32>
    %2 = tpu.matmul %0, %1, %cst {dimension_numbers = #tpu.dot_dimension_numbers<[1], [0], [0], [1], [0, 0, 1, 1], [], []>} : vector<16x128xbf16>, vector<128x128xbf16>, vector<16x128xf32> -> vector<16x128xf32>
    %cst_3 = arith.constant dense<0.000000e+00> : vector<128xf32>
    %3 = vector.multi_reduction <add>, %2, %cst_3 [0] : vector<16x128xf32> to vector<128xf32>
    %4 = vector.shape_cast %3 : vector<128xf32> to vector<1x128xf32>
    %cst_4 = arith.constant 1.250000e-01 : f32
    %5 = vector.broadcast %cst_4 : f32 to vector<1x128xf32>
    %6 = arith.mulf %4, %5 : vector<1x128xf32>
    %7 = vector.broadcast %6 : vector<1x128xf32> to vector<16x128xf32>
    %8 = arith.subf %2, %7 : vector<16x128xf32>
    %9 = arith.mulf %8, %8 : vector<16x128xf32>
    %cst_5 = arith.constant dense<0.000000e+00> : vector<128xf32>
    %10 = vector.multi_reduction <add>, %9, %cst_5 [0] : vector<16x128xf32> to vector<128xf32>
    %11 = vector.shape_cast %10 : vector<128xf32> to vector<1x128xf32>
    %12 = arith.mulf %6, %6 : vector<1x128xf32>
    %cst_6 = arith.constant 8.000000e+00 : f32
    %13 = vector.broadcast %cst_6 : f32 to vector<1x128xf32>
    %14 = arith.mulf %13, %12 : vector<1x128xf32>
    %15 = arith.subf %11, %14 : vector<1x128xf32>
    %cst_7 = arith.constant 1.250000e-01 : f32
    %16 = vector.broadcast %cst_7 : f32 to vector<1x128xf32>
    %17 = arith.mulf %15, %16 : vector<1x128xf32>
    %cst_8 = arith.constant 0.000000e+00 : f32
    %18 = vector.broadcast %cst_8 : f32 to vector<1x128xf32>
    %19 = arith.maximumf %17, %18 : vector<1x128xf32>
    %c0_9 = arith.constant 0 : index
    %c0_10 = arith.constant 0 : index
    %20 = vector.load %arg3[%c0_9, %c0_10] : memref<1x128xf32, #tpu.memory_space<vmem>>, vector<1x128xf32>
    %cst_11 = arith.constant 9.99999974E-6 : f32
    %21 = vector.broadcast %cst_11 : f32 to vector<1x128xf32>
    %22 = arith.addf %19, %21 : vector<1x128xf32>
    %23 = math.rsqrt %22 : vector<1x128xf32>
    %24 = arith.mulf %20, %23 : vector<1x128xf32>
    %25 = vector.broadcast %24 : vector<1x128xf32> to vector<16x128xf32>
    %26 = arith.mulf %8, %25 : vector<16x128xf32>
    %c0_12 = arith.constant 0 : index
    %c0_13 = arith.constant 0 : index
    %27 = vector.load %arg4[%c0_12, %c0_13] : memref<1x128xf32, #tpu.memory_space<vmem>>, vector<1x128xf32>
    %28 = vector.broadcast %27 : vector<1x128xf32> to vector<16x128xf32>
    %29 = arith.addf %26, %28 : vector<16x128xf32>
    %cst_14 = arith.constant 0.000000e+00 : f32
    %30 = vector.broadcast %cst_14 : f32 to vector<16x128xf32>
    %31 = arith.maximumf %29, %30 : vector<16x128xf32>
    %c0_15 = arith.constant 0 : index
    %c0_16 = arith.constant 0 : index
    %32 = vector.load %arg5[%c0_15, %c0_16] : memref<16x128xf32, #tpu.memory_space<vmem>>, vector<16x128xf32>
    tpu.vector_store %arg5[%c0_15, %c0_16], %31 {strides = array<i32>} : memref<16x128xf32, #tpu.memory_space<vmem>>, vector<16x128xf32>,
    return
  }
  func.func @transform_0(%arg0: i32) -> (i32, i32) {
    %c0_i32 = arith.constant 0 : i32
    %c0_i32_0 = arith.constant 0 : i32
    %c0_i32_1 = arith.constant 0 : i32
    return %c0_i32, %c0_i32_0 : i32, i32
  }
  func.func @transform_1(%arg0: i32) -> (i32, i32) {
    %c0_i32 = arith.constant 0 : i32
    %c0_i32_0 = arith.constant 0 : i32
    return %c0_i32, %arg0 : i32, i32
  }
  func.func @transform_2(%arg0: i32) -> (i32, i32) {
    %c0_i32 = arith.constant 0 : i32
    %c0_i32_0 = arith.constant 0 : i32
    return %c0_i32, %arg0 : i32, i32
  }
  func.func @transform_3(%arg0: i32) -> (i32, i32) {
    %c0_i32 = arith.constant 0 : i32
    %c0_i32_0 = arith.constant 0 : i32
    return %c0_i32, %arg0 : i32, i32
  }
  func.func @transform_4(%arg0: i32) -> (i32, i32) {
    %c0_i32 = arith.constant 0 : i32
    %c0_i32_0 = arith.constant 0 : i32
    return %c0_i32, %arg0 : i32, i32
  }
}

</mosaic_0001>

<llo_original>
// kernel: simple_fc_apply.1
$region0: #{simple_fc_apply.1}
  #allocation0 [shape = 'u32[]', space=smem, size = 0x4, offset = 0x4, fixed_abs, tag = 'smem constant byte address 0x4 - core index']
  #allocation1 [shape = 'u32[144,128]{1,0:T(1,128)}', space=vmem, size = 0x12000, scoped, tag = 'internal scratch']
  %s0 = inlined_call_operand.vmem [shape: bf16[16,128], index: 0, kind: input, shape index: {}]
  %s1 = inlined_call_operand.hbm [shape: bf16[128,128], index: 1, kind: input, shape index: {}]
  %s2 = inlined_call_operand.vmem [shape: f32[1,128], index: 2, kind: input, shape index: {}]
  %s3 = inlined_call_operand.vmem [shape: f32[1,128], index: 3, kind: input, shape index: {}]
  %s4 = inlined_call_operand.vmem [shape: f32[16,128], index: 4, kind: output, shape index: {}]
  %s5 = sld [smem:[#allocation0]]
  $region30: #{simple_fc_apply.1} parent=0
    _
  %s7 = ssub.s32 1, %s5
  %s8 = scalar_select 0, %s7, %s5
  $region1: #{simple_fc_apply.1} parent=0
    #allocation2 [shape = 'u8[32768]{0}', space=vmem, size = 0x8000, scoped, tag = 'input window, operand 1, single buffered']
    #allocation3 [shape = 's32[1]{0}', space=sflag, size = 0x4, scoped, tag = 'scoped memory for simple_fc_apply.1']
    %9 = vsyncpa [#allocation3], 0
    // Predicated region
    $region2: #{simple_fc_apply.1} parent=1 // pred_check
      _
    $region3: #{simple_fc_apply.1} parent=1 // pred_check_branch
      %11 = sbr.rel (0) target = $region5
    $region4: #{simple_fc_apply.1} parent=1 // pred_region
      _
    $region5: #{simple_fc_apply.1} parent=1 // pred_fallthru
      _
    // Predicated region
    $region6: #{simple_fc_apply.1} parent=1 // pred_check
      _
    $region7: #{simple_fc_apply.1} parent=1 // pred_check_branch
      %13 = sbr.rel (0) target = $region9
    $region8: #{simple_fc_apply.1} parent=1 // pred_region
      %s15 = ssub.s32 1024, 1024
      %16 = vsyncadd [#allocation3], %s15
      %s17 = sshll.u32 [#allocation2], 4
      %s18 = int_to_ptr.vmem [resolvable:$true] %s17
      %23 = dma.hbm_to_vmem [thread:$0]  %s1, 1024, %s18, [#allocation3], 64, 64, 4
    $region9: #{simple_fc_apply.1} parent=1 // pred_fallthru
      _
    // Predicated region
    $region10: #{simple_fc_apply.1} parent=1 // pred_check
      _
    $region11: #{simple_fc_apply.1} parent=1 // pred_check_branch
      %25 = sbr.rel (0) target = $region13
    $region12: #{simple_fc_apply.1} parent=1 // pred_region
      _
    $region13: #{simple_fc_apply.1} parent=1 // pred_fallthru
      _
    // Predicated region
    $region14: #{simple_fc_apply.1} parent=1 // pred_check
      _
    $region15: #{simple_fc_apply.1} parent=1 // pred_check_branch
      %27 = sbr.rel (0) target = $region17
    $region16: #{simple_fc_apply.1} parent=1 // pred_region
      _
    $region17: #{simple_fc_apply.1} parent=1 // pred_fallthru
      _
    // Predicated region
    $region18: #{simple_fc_apply.1} parent=1 // pred_check
      _
    $region19: #{simple_fc_apply.1} parent=1 // pred_check_branch
      %29 = sbr.rel (0) target = $region21
    $region20: #{simple_fc_apply.1} parent=1 // pred_region
      %30 = dma.done [#allocation3], 1024
    $region21: #{simple_fc_apply.1} parent=1 // pred_fallthru
      _
    %v32 = vld [vmem:[%s0] sm:$0xf]
    %v33 = vld [vmem:[%s0 + $0x4] sm:$0xf]
    %v34 = vld [vmem:[#allocation2] sm:$0xf]
    %v35 = vld [vmem:[#allocation2 + $0x4] sm:$0xf]
    %v36 = vld [vmem:[#allocation2 + $0x8] sm:$0xf]
    %v37 = vld [vmem:[#allocation2 + $0xc] sm:$0xf]
    %v38 = vld [vmem:[#allocation2 + $0x10] sm:$0xf]
    %v39 = vld [vmem:[#allocation2 + $0x14] sm:$0xf]
    %v40 = vld [vmem:[#allocation2 + $0x18] sm:$0xf]
    %v41 = vld [vmem:[#allocation2 + $0x1c] sm:$0xf]
    %v42 = vld [vmem:[#allocation2 + $0x20] sm:$0xf]
    %v43 = vld [vmem:[#allocation2 + $0x24] sm:$0xf]
    %v44 = vld [vmem:[#allocation2 + $0x28] sm:$0xf]
    %v45 = vld [vmem:[#allocation2 + $0x2c] sm:$0xf]
    %v46 = vld [vmem:[#allocation2 + $0x30] sm:$0xf]
    %v47 = vld [vmem:[#allocation2 + $0x34] sm:$0xf]
    %v48 = vld [vmem:[#allocation2 + $0x38] sm:$0xf]
    %v49 = vld [vmem:[#allocation2 + $0x3c] sm:$0xf]
    %v52 = vunpack.c.l.b16 %v32
    %v53 = vunpack.c.l.b16 %v33
    %v54 = vpack.c.b16 %v53, %v52
    %v72 = vunpack.c.l.b16 %v34
    %v73 = vunpack.c.l.b16 %v35
    %v74 = vunpack.c.l.b16 %v36
    %v75 = vunpack.c.l.b16 %v37
    %v76 = vunpack.c.l.b16 %v38
    %v77 = vunpack.c.l.b16 %v39
    %v78 = vunpack.c.l.b16 %v40
    %v79 = vunpack.c.l.b16 %v41
    %v80 = vunpack.c.l.b16 %v42
    %v81 = vunpack.c.l.b16 %v43
    %v82 = vunpack.c.l.b16 %v44
    %v83 = vunpack.c.l.b16 %v45
    %v84 = vunpack.c.l.b16 %v46
    %v85 = vunpack.c.l.b16 %v47
    %v86 = vunpack.c.l.b16 %v48
    %v87 = vunpack.c.l.b16 %v49
    %v88 = vpack.c.b16 %v73, %v72
    %v89 = vpack.c.b16 %v75, %v74
    %v90 = vpack.c.b16 %v77, %v76
    %v91 = vpack.c.b16 %v79, %v78
    %v92 = vpack.c.b16 %v81, %v80
    %v93 = vpack.c.b16 %v83, %v82
    %v94 = vpack.c.b16 %v85, %v84
    %v95 = vpack.c.b16 %v87, %v86
    %104 = vmatprep.subr.bf16.mxu0 0
    %105 = vmatpush1.bf16.msra.mxu0 %v95
    %106 = vmatprep.subr.bf16.mxu0 0
    %107 = vmatpush1.bf16.msra.mxu0 %v94
    %108 = vmatprep.subr.bf16.mxu0 0
    %109 = vmatpush1.bf16.msra.mxu0 %v93
    %110 = vmatprep.subr.bf16.mxu0 0
    %111 = vmatpush1.bf16.msra.mxu0 %v92
    %112 = vmatprep.subr.bf16.mxu0 0
    %113 = vmatpush1.bf16.msra.mxu0 %v91
    %114 = vmatprep.subr.bf16.mxu0 0
    %115 = vmatpush1.bf16.msra.mxu0 %v90
    %116 = vmatprep.subr.bf16.mxu0 0
    %117 = vmatpush1.bf16.msra.mxu0 %v89
    %118 = vmatprep.subr.bf16.mxu0 0
    %119 = vmatpush1.bf16.msra.mxu0 %v88
    %120 = vmatprep.subr.bf16.mxu0 0
    %121 = vmatpush2.bf16.msra.mxu0 0
    %122 = vmatprep.subr.bf16.mxu0 0
    %123 = vmatpush2.bf16.msra.mxu0 0
    %124 = vmatprep.subr.bf16.mxu0 0
    %125 = vmatpush2.bf16.msra.mxu0 0
    %126 = vmatprep.subr.bf16.mxu0 0
    %127 = vmatpush2.bf16.msra.mxu0 0
    %128 = vmatprep.subr.bf16.mxu0 0
    %129 = vmatpush2.bf16.msra.mxu0 0
    %130 = vmatprep.subr.bf16.mxu0 0
    %131 = vmatpush2.bf16.msra.mxu0 0
    %132 = vmatprep.subr.bf16.mxu0 0
    %133 = vmatpush2.bf16.msra.mxu0 0
    %134 = vmatprep.subr.bf16.mxu0 0
    %135 = vmatpush2.bf16.msra.mxu0 0
    %136 = vmatprep.mubr.bf16.mxu0 0
    %137 = vmatmul.mubr.bf16.gmra.mxu0 %v54
    %v138 = vpop.f32.mrf.mxu0
    %v139 = vadd.f32 0.0, %v138
    %v140 = vpop.f32.mrf.mxu0
    %v141 = vpop.f32.mrf.mxu0
    %v142 = vadd.f32 0.0, %v141
    %v143 = vpop.f32.mrf.mxu0
    %144 = vdwg.mxu0
    %v145 = vadd.f32 %v139, %v142
    %v146 = vrot.slane %v145, 4
    %v147 = vadd.f32 %v145, %v146
    %v148 = vrot.slane %v147, 2
    %v149 = vadd.f32 %v147, %v148
    %v150 = vrot.slane %v149, 1
    %v151 = vadd.f32 %v149, %v150
    %v152 = vmul.f32 %v151, 0.125
    %v153 = vsub.f32 %v139, %v152
    %v154 = vsub.f32 %v142, %v152
    %v155 = vmul.f32 %v153, %v153
    %v156 = vmul.f32 %v154, %v154
    %v157 = vadd.f32 %v155, %v156
    %v158 = vrot.slane %v157, 4
    %v159 = vadd.f32 %v157, %v158
    %v160 = vrot.slane %v159, 2
    %v161 = vadd.f32 %v159, %v160
    %v162 = vrot.slane %v161, 1
    %v163 = vadd.f32 %v161, %v162
    %v164 = vmul.f32 %v152, %v152
    %v165 = vmul.f32 %v164, 8.0
    %v166 = vsub.f32 %v163, %v165
    %v167 = vmul.f32 %v166, 0.125
    %v168 = vmax.f32 %v167, 0.0
    %v169 = vld [vmem:[%s2] sm:$0x1]
    %v170 = vadd.f32 %v168, 1e-05
    %v171 = vrsqrt.pop %v170
    %v172 = vmul.f32 %v169, %v171
    %v174 = vlaneseq
    %v175 = vshrl.u32 %v174, 7
    %v176 = vsub.s32 0, %v175
    %v177 = vrot.slane %v172, %v176
    %v179 = vmul.f32 %v153, %v177
    %v180 = vmul.f32 %v154, %v177
    %v181 = vld [vmem:[%s3] sm:$0x1]
    %v183 = vlaneseq
    %v184 = vshrl.u32 %v183, 7
    %v185 = vsub.s32 0, %v184
    %v186 = vrot.slane %v181, %v185
    %v188 = vadd.f32 %v179, %v186
    %v189 = vadd.f32 %v180, %v186
    %v190 = vmax.f32 %v188, 0.0
    %v191 = vmax.f32 %v189, 0.0
    %192 = vst [vmem:[%s4] sm:$0xff] %v190
    %193 = vst [vmem:[%s4 + $0x8] sm:$0xff] %v191
    // Predicated region
    $region22: #{simple_fc_apply.1} parent=1 // pred_check
      _
    $region23: #{simple_fc_apply.1} parent=1 // pred_check_branch
      %195 = sbr.rel (0) target = $region25
    $region24: #{simple_fc_apply.1} parent=1 // pred_region
      _
    $region25: #{simple_fc_apply.1} parent=1 // pred_fallthru
      _
    // Predicated region
    $region26: #{simple_fc_apply.1} parent=1 // pred_check
      _
    $region27: #{simple_fc_apply.1} parent=1 // pred_check_branch
      %197 = sbr.rel (0) target = $region29
    $region28: #{simple_fc_apply.1} parent=1 // pred_region
      _
    $region29: #{simple_fc_apply.1} parent=1 // pred_fallthru
      _
    %198 = vsyncpa [#allocation3], 1

</llo_original>
